<compile_context>
chip_gen: v6e
topology: v6e:2x2x1
jax: 0.10.0
libtpu: 0.0.40
codegen_flags: <defaults>
</compile_context>

<pallas_src>
import numpy as np
import jax
import jax.numpy as jnp
from jax.experimental import pallas as pl
from jax.experimental.pallas import tpu as pltpu

START_TAG = "<START>"
STOP_TAG = "<STOP>"

SMEM_SPEC = pl.BlockSpec(memory_space=pltpu.MemorySpace.SMEM)
VMEM_SPEC = pl.BlockSpec(memory_space=pltpu.MemorySpace.VMEM)


def _round_up(x, m):
    return ((x + m - 1) // m) * m


# ----------------------------------------------------------------------------
# Lattice-LSTM recurrence kernel: single pallas_call, no grid, in-kernel loop.
# ----------------------------------------------------------------------------
def _make_lattice_kernel(H, MW):
    def kernel(meta_ref, wbase_ref, wcount_ref,           # SMEM int32
               xg_ref,      # [T_pad, 1, 4H]  char_emb @ Wx + b, gates [f|i|o|c]
               wg_ref,      # [MW,    1, 3H]  word_emb @ Wx + b, gates [f|i|c]
               eg_ref,      # [MW,    1, H ]  end_char_emb @ Wl_e + b_l
               h0_ref, c0_ref,                # [1, H]
               c_wh_ref,    # [H, 4H]  recurrent char gate weights
               w_wh_ref,    # [H, 3H]  recurrent word gate weights
               wl_h_ref,    # [H, H ]  recurrent link-gate weights
               hid_ref,     # out: [T_pad, 1, H] hidden states
               h_scr, c_scr, wcell_scr, wweight_scr):
        t_len = meta_ref[0]

        # Init carries / shared word-state list (zero init keeps the masked
        # softmax merge free of 0*garbage poisoning).
        h_scr[...] = h0_ref[...]
        c_scr[...] = c0_ref[...]
        wcell_scr[...] = jnp.zeros_like(wcell_scr)
        wweight_scr[...] = jnp.zeros_like(wweight_scr)
        hid_ref[...] = jnp.zeros_like(hid_ref)

        @pl.loop(0, t_len)
        def _step(t):
            h = h_scr[...]                                     # [1, H]
            # Recurrent half of the fused char gates (x half precomputed).
            gates = xg_ref[t] + jnp.dot(h, c_wh_ref[...],
                                        preferred_element_type=jnp.float32)
            sig = jax.nn.sigmoid(gates[:, 0:3 * H])            # [f|i|o] at once
            f = sig[:, 0:H]
            i = sig[:, H:2 * H]
            o = sig[:, 2 * H:3 * H]
            c_ = jnp.tanh(gates[:, 3 * H:4 * H])

            n = wbase_ref[t]                  # word states created before t
            c_scr[...] = f * c_scr[...] + i * c_   # plain (no-lattice) path

            @pl.when(n > 0)
            def _merge():
                # softmax over rows [i ; word_weights[:n]], weighted sum of
                # [c_ ; word_cells[:n]] — masked form, no in-kernel concat.
                i3 = i.reshape(1, 1, H)
                c3 = c_.reshape(1, 1, H)
                row = jax.lax.broadcasted_iota(jnp.int32, (MW, 1, H), 0)
                valid = row < n
                ww = wweight_scr[...]
                wmax = jnp.maximum(
                    jnp.max(jnp.where(valid, ww, -1e30), axis=0, keepdims=True),
                    i3)
                e_w = jnp.where(valid, jnp.exp(ww - wmax), 0.0)
                e0 = jnp.exp(i3 - wmax)
                denom = e0 + jnp.sum(e_w, axis=0, keepdims=True)
                numer = e0 * c3 + jnp.sum(e_w * wcell_scr[...], axis=0,
                                          keepdims=True)
                c_scr[...] = (numer / denom)[0]

            c_cur = c_scr[...]
            h_new = o * jnp.tanh(c_cur)
            h_scr[...] = h_new
            hid_ref[pl.ds(t, 1), :, :] = h_new[None]

            # Word steps starting at this position (appended to the shared
            # word-state list, matching the reference's aliased [[]]*length).
            wc = wcount_ref[t]
            hw = jnp.dot(h_new, w_wh_ref[...],
                         preferred_element_type=jnp.float32)   # shared [1,3H]

            @pl.loop(0, wc)
            def _word(k):
                slot = n + k
                g = wg_ref[slot] + hw                          # [1,3H]=[f|i|c]
                sg = jax.nn.sigmoid(g[:, 0:2 * H])
                fw = sg[:, 0:H]
                iw = sg[:, H:2 * H]
                cw = jnp.tanh(g[:, 2 * H:3 * H])
                wcs = fw * c_cur + iw * cw
                wwt = jax.nn.sigmoid(
                    eg_ref[slot] + jnp.dot(wcs, wl_h_ref[...],
                                           preferred_element_type=jnp.float32))
                wcell_scr[pl.ds(slot, 1), :, :] = wcs[None]
                wweight_scr[pl.ds(slot, 1), :, :] = wwt[None]

    return kernel


def lattice_features_pallas(q, input_ids, input_words, h0, c0):
    """Lattice-LSTM features; returns feats [T, L]."""
    T = len(input_ids)
    H = h0.shape[1]
    T_pad = _round_up(max(T, 1), 8)

    # Host-side lattice metadata (data-dependent graph -> int32 arrays),
    # padded to fixed 8-buckets so small shape changes don't recompile.
    wbase, wcount, flat_wids, flat_eids = [], [], [], []
    cum = 0
    for t in range(T):
        wbase.append(cum)
        words = input_words[t]
        wcount.append(len(words))
        for wid, wlen in words:
            flat_wids.append(wid)
            flat_eids.append(input_ids[t + wlen - 1])
        cum += len(words)
    MW = _round_up(max(cum, 1), 8)
    flat_wids += [0] * (MW - len(flat_wids))
    flat_eids += [0] * (MW - len(flat_eids))
    wbase += [0] * (T_pad - T)
    wcount += [0] * (T_pad - T)
    cids = list(input_ids) + [0] * (T_pad - T)

    meta = jnp.asarray([T], dtype=jnp.int32)
    wbase_a = jnp.asarray(wbase, dtype=jnp.int32)
    wcount_a = jnp.asarray(wcount, dtype=jnp.int32)
    cids_a = jnp.asarray(cids, dtype=jnp.int32)
    wids_a = jnp.asarray(flat_wids, dtype=jnp.int32)
    eids_a = jnp.asarray(flat_eids, dtype=jnp.int32)

    # Batched input-side projections (plain XLA): embedding row-gathers plus
    # full-width MXU matmuls; embedding tables never enter kernel VMEM.
    ce = jnp.take(q["char_emb"], cids_a, axis=0)            # [T_pad, E]
    xg3 = (ce @ q["c_wx"] + q["c_b"])[:, None, :]           # [T_pad, 1, 4H]
    we = jnp.take(q["word_emb"], wids_a, axis=0)            # [MW, E]
    wg3 = (we @ q["w_wx"] + q["w_b"])[:, None, :]           # [MW, 1, 3H]
    ee = jnp.take(q["char_emb"], eids_a, axis=0)            # [MW, E]
    eg3 = (ee @ q["wl_e"] + q["wl_b"])[:, None, :]          # [MW, 1, H]

    hid3 = pl.pallas_call(
        _make_lattice_kernel(H, MW),
        out_shape=jax.ShapeDtypeStruct((T_pad, 1, H), jnp.float32),
        in_specs=[SMEM_SPEC, SMEM_SPEC, SMEM_SPEC,
                  VMEM_SPEC, VMEM_SPEC, VMEM_SPEC,
                  VMEM_SPEC, VMEM_SPEC,
                  VMEM_SPEC, VMEM_SPEC, VMEM_SPEC],
        out_specs=VMEM_SPEC,
        scratch_shapes=[
            pltpu.VMEM((1, H), jnp.float32),        # char hidden carry
            pltpu.VMEM((1, H), jnp.float32),        # char cell carry
            pltpu.VMEM((MW, 1, H), jnp.float32),    # shared word cell states
            pltpu.VMEM((MW, 1, H), jnp.float32),    # shared word weights
        ],
        # Explicit scoped-VMEM limit: the resident working set here is tiny
        # (<1 MiB), so 16 MiB is ample headroom on v5e/v6e/v7x alike.
        compiler_params=pltpu.CompilerParams(
            vmem_limit_bytes=16 * 1024 * 1024),
    )(meta, wbase_a, wcount_a, xg3, wg3, eg3, h0, c0,
      q["c_wh"], q["w_wh"], q["wl_h"])

    # hidden2label hoisted out of the recurrence: one [T,H]@[H,L] matmul.
    return hid3[:T, 0, :] @ q["h2l_w"] + q["h2l_b"]


# ----------------------------------------------------------------------------
# Viterbi decode: recursion + back-pointer walk on the scalar unit (SMEM),
# flattened 1-D SMEM buffers, dynamic sequence length.
# TODO(synk): vectorize the L x L recursion on the VPU if the label set grows.
# ----------------------------------------------------------------------------
def _make_viterbi_kernel(L):
    def kernel(meta_ref, feats_ref, transT_ref, score_ref, path_ref,
               alpha_scr, bt_scr):
        start = meta_ref[0]
        stop = meta_ref[1]
        t_len = meta_ref[2]
        T_pad = path_ref.shape[0]

        def zinit(j, _):
            path_ref[j] = 0
            return 0
        jax.lax.fori_loop(0, T_pad, zinit, 0)

        def init_j(j, _):
            alpha_scr[j] = jnp.where(j == start, jnp.float32(0.0),
                                     jnp.float32(-10000.0))
            return 0
        jax.lax.fori_loop(0, L, init_j, 0)

        @pl.loop(0, t_len)
        def _frame(t):
            src = (t % 2) * L
            dst = L - src

            def per_j(j, _unused):
                def per_i(i, best):
                    bv, bi = best
                    s = alpha_scr[src + i] + transT_ref[i * L + j]
                    better = s > bv
                    return (jnp.where(better, s, bv), jnp.where(better, i, bi))
                bv, bi = jax.lax.fori_loop(
                    0, L, per_i, (jnp.float32(-3.0e38), jnp.int32(0)))
                alpha_scr[dst + j] = bv + feats_ref[t * L + j]
                bt_scr[t * L + j] = bi
                return 0
            jax.lax.fori_loop(0, L, per_j, 0)

        fsrc = (t_len % 2) * L

        def final_i(i, best):
            bv, bi = best
            s = alpha_scr[fsrc + i] + transT_ref[i * L + stop]
            better = s > bv
            return (jnp.where(better, s, bv), jnp.where(better, i, bi))
        fval, fidx = jax.lax.fori_loop(
            0, L, final_i, (jnp.float32(-3.0e38), jnp.int32(0)))

        score_ref[0] = fval
        path_ref[t_len - 1] = fidx

        @pl.loop(1, t_len)
        def _walk(k):
            t = t_len - k
            prev = bt_scr[t * L + path_ref[t]]
            path_ref[t - 1] = prev

    return kernel


def viterbi_pallas(feats, transition, start_idx, stop_idx):
    feats = jnp.asarray(feats, dtype=jnp.float32)
    T, L = feats.shape
    T_pad = _round_up(max(T, 1), 8)
    feats_p = jnp.zeros((T_pad, L), jnp.float32).at[:T].set(feats)
    transT = jnp.asarray(transition, dtype=jnp.float32).T   # [prev, next]
    meta = jnp.asarray([start_idx, stop_idx, T], dtype=jnp.int32)
    score, path = pl.pallas_call(
        _make_viterbi_kernel(L),
        out_shape=(jax.ShapeDtypeStruct((1,), jnp.float32),
                   jax.ShapeDtypeStruct((T_pad,), jnp.int32)),
        in_specs=[SMEM_SPEC, SMEM_SPEC, SMEM_SPEC],
        out_specs=(SMEM_SPEC, SMEM_SPEC),
        scratch_shapes=[pltpu.SMEM((2 * L,), jnp.float32),
                        pltpu.SMEM((T_pad * L,), jnp.int32)],
    )(meta, feats_p.reshape(-1), transT.reshape(-1))
    return score, path[:T]          # stay on device; caller converts once


# ----------------------------------------------------------------------------
# Pure-JAX / numpy reference (torch-faithful math, incl. the shared-list
# aliasing of `words_cell_states = [[]] * length`)
# ----------------------------------------------------------------------------
def char_step_ref(p, char_embed, h_pre, c_pre, word_states):
    xcat = jnp.concatenate([char_embed, h_pre], axis=1)
    f = jax.nn.sigmoid(xcat @ p["c_wf"] + p["c_bf"])
    i = jax.nn.sigmoid(xcat @ p["c_wi"] + p["c_bi"])
    c_ = jnp.tanh(xcat @ p["c_wc"] + p["c_bc"])
    o = jax.nn.sigmoid(xcat @ p["c_wo"] + p["c_bo"])
    if not word_states:
        c_cur = f * c_pre + i * c_
    else:
        weights = jnp.concatenate([i] + [w for _, w in word_states], axis=0)
        cells = jnp.concatenate([c_] + [c for c, _ in word_states], axis=0)
        sm = jax.nn.softmax(weights, axis=0)
        c_cur = jnp.sum(sm * cells, axis=0, keepdims=True)
    return o * jnp.tanh(c_cur), c_cur


def word_step_ref(p, word_embed, h, c, end_embed):
    xcat = jnp.concatenate([word_embed, h], axis=1)
    i = jax.nn.sigmoid(xcat @ p["w_wi"] + p["w_bi"])
    f = jax.nn.sigmoid(xcat @ p["w_wf"] + p["w_bf"])
    c_ = jnp.tanh(xcat @ p["w_wc"] + p["w_bc"])
    wcs = f * c + i * c_
    gate_in = jnp.concatenate([end_embed, wcs], axis=1)
    ww = jax.nn.sigmoid(gate_in @ p["w_wl"] + p["w_bl"])
    return wcs, ww


def lattice_features_ref(p, input_ids, input_words, h0, c0):
    char_h, char_c = h0, c0
    shared_states = []   # all positions alias one list in the PyTorch code
    hidden = []
    for idx, cid in enumerate(input_ids):
        ce = p["char_embeds"][cid][None, :]
        char_h, char_c = char_step_ref(p, ce, char_h, char_c,
                                       list(shared_states))
        hidden.append(char_h)
        for wid, wlen in input_words[idx]:
            we = p["word_embeds"][wid][None, :]
            ee = p["char_embeds"][input_ids[idx + wlen - 1]][None, :]
            wcs, ww = word_step_ref(p, we, char_h, char_c, ee)
            shared_states.append((wcs, ww))
    hs = jnp.concatenate(hidden, axis=0)
    return hs @ p["h2l_w"] + p["h2l_b"]


def viterbi_ref(feats, transition, start_idx, stop_idx):
    feats = np.asarray(feats)
    trans = np.asarray(transition)
    T, L = feats.shape
    alpha = np.full((1, L), -10000.0, np.float32)
    alpha[0, start_idx] = 0.0
    backtrace = []
    for t in range(T):
        smat = alpha.T + feats[t][None, :] + trans.T
        backtrace.append(smat.argmax(axis=0))
        alpha = smat.max(axis=0)[None, :]
    fin = alpha[0] + trans[stop_idx]
    best = int(fin.argmax())
    val = float(fin.max())
    path = [best]
    for bptrs in reversed(backtrace[1:]):
        best = int(bptrs[best])
        path.append(best)
    return val, path[::-1]


# ----------------------------------------------------------------------------
# Parameter init (per-gate, torch-like) + packing for the fused kernel
# ----------------------------------------------------------------------------
def init_params(key, char_size, word_size, embed_dim, hidden_dim, label_size,
                start_idx, stop_idx):
    ks = jax.random.split(key, 20)
    scale = 0.1
    EH = embed_dim + hidden_dim

    def nrm(k, shape):
        return (scale * jax.random.normal(k, shape)).astype(jnp.float32)

    p = {}
    p["char_embeds"] = nrm(ks[0], (char_size, embed_dim))
    p["word_embeds"] = nrm(ks[1], (word_size, embed_dim))
    for j, g in enumerate("fico"):
        p[f"c_w{g}"] = nrm(ks[2 + j], (EH, hidden_dim))
        p[f"c_b{g}"] = nrm(ks[6 + j], (1, hidden_dim))
    for j, g in enumerate("fic"):
        p[f"w_w{g}"] = nrm(ks[10 + j], (EH, hidden_dim))
        p[f"w_b{g}"] = nrm(ks[13 + j], (1, hidden_dim))
    p["w_wl"] = nrm(ks[16], (EH, hidden_dim))
    p["w_bl"] = nrm(ks[17], (1, hidden_dim))
    p["h2l_w"] = nrm(ks[18], (hidden_dim, label_size))
    p["h2l_b"] = nrm(ks[19], (1, label_size))
    trans = jax.random.normal(jax.random.fold_in(key, 99),
                              (label_size, label_size)).astype(jnp.float32)
    trans = trans.at[start_idx, :].set(-10000.0)
    trans = trans.at[:, stop_idx].set(-10000.0)
    p["transition"] = trans
    return p


def pack_params(p, embed_dim):
    """Fuse per-gate weights; char gates packed [f|i|o|c] (sigmoid block first,
    tanh block last), word gates [f|i|c]."""
    E = embed_dim
    q = {}
    q["char_emb"] = p["char_embeds"]
    q["word_emb"] = p["word_embeds"]
    q["c_wx"] = jnp.concatenate(
        [p["c_wf"][:E], p["c_wi"][:E], p["c_wo"][:E], p["c_wc"][:E]], axis=1)
    q["c_wh"] = jnp.concatenate(
        [p["c_wf"][E:], p["c_wi"][E:], p["c_wo"][E:], p["c_wc"][E:]], axis=1)
    q["c_b"] = jnp.concatenate(
        [p["c_bf"], p["c_bi"], p["c_bo"], p["c_bc"]], axis=1)
    q["w_wx"] = jnp.concatenate(
        [p["w_wf"][:E], p["w_wi"][:E], p["w_wc"][:E]], axis=1)
    q["w_wh"] = jnp.concatenate(
        [p["w_wf"][E:], p["w_wi"][E:], p["w_wc"][E:]], axis=1)
    q["w_b"] = jnp.concatenate([p["w_bf"], p["w_bi"], p["w_bc"]], axis=1)
    q["wl_e"] = p["w_wl"][:E]
    q["wl_h"] = p["w_wl"][E:]
    q["wl_b"] = p["w_bl"]
    q["h2l_w"] = p["h2l_w"]
    q["h2l_b"] = p["h2l_b"]
    return q


# ----------------------------------------------------------------------------
if __name__ == "__main__":
    key = jax.random.PRNGKey(0)
    char_size, word_size = 20, 12
    embed_dim, hidden_dim = 16, 32
    label2idx = {"B": 0, "I": 1, "O": 2, START_TAG: 3, STOP_TAG: 4}
    label_size = len(label2idx)
    start_idx, stop_idx = label2idx[START_TAG], label2idx[STOP_TAG]
    T = 8

    params = init_params(key, char_size, word_size, embed_dim, hidden_dim,
                         label_size, start_idx, stop_idx)
    packed = pack_params(params, embed_dim)

    kh, kc, kid = jax.random.split(jax.random.fold_in(key, 7), 3)
    h0 = (0.1 * jax.random.normal(kh, (1, hidden_dim))).astype(jnp.float32)
    c0 = (0.1 * jax.random.normal(kc, (1, hidden_dim))).astype(jnp.float32)

    input_ids = [int(x) for x in jax.random.randint(kid, (T,), 0, char_size)]
    input_words = [[] for _ in range(T)]
    input_words[1] = [(3, 3)]   # word of length 3 starting at char 1
    input_words[4] = [(7, 2)]   # word of length 2 starting at char 4

    # Pallas forward: fused recurrence kernel, then on-chip viterbi decode.
    feats = lattice_features_pallas(packed, input_ids, input_words, h0, c0)
    feats = jax.block_until_ready(feats)

    score_dev, path_dev = viterbi_pallas(feats, params["transition"],
                                         start_idx, stop_idx)
    jax.block_until_ready((score_dev, path_dev))
    score = float(np.asarray(score_dev)[0])
    path = [int(x) for x in np.asarray(path_dev)]

    # Reference: torch-faithful pure JAX lattice glue + numpy viterbi.
    feats_ref = lattice_features_ref(params, input_ids, input_words, h0, c0)
    feats_ref = jax.block_until_ready(feats_ref)
    np.testing.assert_allclose(np.asarray(feats), np.asarray(feats_ref),
                               rtol=3e-3, atol=3e-3)

    score_ref, gold_path = viterbi_ref(np.asarray(feats), params["transition"],
                                       start_idx, stop_idx)
    assert path == gold_path, (path, gold_path)
    assert abs(score - score_ref) < 1e-2, (score, score_ref)

    print("KERNEL_OK")
</pallas_src>

<mosaic_0001>
module attributes {stable_mosaic.version = 11 : i64} {
  func.func @kernel(%arg0: memref<1xi32, #tpu.memory_space<smem>>, %arg1: memref<8xi32, #tpu.memory_space<smem>>, %arg2: memref<8xi32, #tpu.memory_space<smem>>, %arg3: memref<8x1x128xf32, #tpu.memory_space<vmem>>, %arg4: memref<8x1x96xf32, #tpu.memory_space<vmem>>, %arg5: memref<8x1x32xf32, #tpu.memory_space<vmem>>, %arg6: memref<1x32xf32, #tpu.memory_space<vmem>>, %arg7: memref<1x32xf32, #tpu.memory_space<vmem>>, %arg8: memref<32x128xf32, #tpu.memory_space<vmem>>, %arg9: memref<32x96xf32, #tpu.memory_space<vmem>>, %arg10: memref<32x32xf32, #tpu.memory_space<vmem>>, %arg11: memref<8x1x32xf32, #tpu.memory_space<vmem>>, %arg12: memref<1x32xf32, #tpu.memory_space<vmem>>, %arg13: memref<1x32xf32, #tpu.memory_space<vmem>>, %arg14: memref<8x1x32xf32, #tpu.memory_space<vmem>>, %arg15: memref<8x1x32xf32, #tpu.memory_space<vmem>>) attributes {dimension_semantics = [], scalar_prefetch = 0 : i64, scratch_operands = 4 : i64, tpu.core_type = #tpu.core_type<tc>} {
    %c0 = arith.constant 0 : index
    %0 = memref.load %arg0[%c0] : memref<1xi32, #tpu.memory_space<smem>>
    %c0_0 = arith.constant 0 : index
    %c0_1 = arith.constant 0 : index
    %1 = vector.load %arg6[%c0_0, %c0_1] : memref<1x32xf32, #tpu.memory_space<vmem>>, vector<1x32xf32>
    %c0_2 = arith.constant 0 : index
    %c0_3 = arith.constant 0 : index
    %2 = vector.load %arg12[%c0_2, %c0_3] : memref<1x32xf32, #tpu.memory_space<vmem>>, vector<1x32xf32>
    tpu.vector_store %arg12[%c0_2, %c0_3], %1 {strides = array<i32>} : memref<1x32xf32, #tpu.memory_space<vmem>>, vector<1x32xf32>,
    %c0_4 = arith.constant 0 : index
    %c0_5 = arith.constant 0 : index
    %3 = vector.load %arg7[%c0_4, %c0_5] : memref<1x32xf32, #tpu.memory_space<vmem>>, vector<1x32xf32>
    %c0_6 = arith.constant 0 : index
    %c0_7 = arith.constant 0 : index
    %4 = vector.load %arg13[%c0_6, %c0_7] : memref<1x32xf32, #tpu.memory_space<vmem>>, vector<1x32xf32>
    tpu.vector_store %arg13[%c0_6, %c0_7], %3 {strides = array<i32>} : memref<1x32xf32, #tpu.memory_space<vmem>>, vector<1x32xf32>,
    %cst = arith.constant 0.000000e+00 : f32
    %5 = vector.broadcast %cst : f32 to vector<8x1x32xf32>
    %c0_8 = arith.constant 0 : index
    %c0_9 = arith.constant 0 : index
    %c0_10 = arith.constant 0 : index
    %6 = vector.load %arg14[%c0_8, %c0_9, %c0_10] : memref<8x1x32xf32, #tpu.memory_space<vmem>>, vector<8x1x32xf32>
    tpu.vector_store %arg14[%c0_8, %c0_9, %c0_10], %5 {strides = array<i32>} : memref<8x1x32xf32, #tpu.memory_space<vmem>>, vector<8x1x32xf32>,
    %cst_11 = arith.constant 0.000000e+00 : f32
    %7 = vector.broadcast %cst_11 : f32 to vector<8x1x32xf32>
    %c0_12 = arith.constant 0 : index
    %c0_13 = arith.constant 0 : index
    %c0_14 = arith.constant 0 : index
    %8 = vector.load %arg15[%c0_12, %c0_13, %c0_14] : memref<8x1x32xf32, #tpu.memory_space<vmem>>, vector<8x1x32xf32>
    tpu.vector_store %arg15[%c0_12, %c0_13, %c0_14], %7 {strides = array<i32>} : memref<8x1x32xf32, #tpu.memory_space<vmem>>, vector<8x1x32xf32>,
    %cst_15 = arith.constant 0.000000e+00 : f32
    %9 = vector.broadcast %cst_15 : f32 to vector<8x1x32xf32>
    %c0_16 = arith.constant 0 : index
    %c0_17 = arith.constant 0 : index
    %c0_18 = arith.constant 0 : index
    %10 = vector.load %arg11[%c0_16, %c0_17, %c0_18] : memref<8x1x32xf32, #tpu.memory_space<vmem>>, vector<8x1x32xf32>
    tpu.vector_store %arg11[%c0_16, %c0_17, %c0_18], %9 {strides = array<i32>} : memref<8x1x32xf32, #tpu.memory_space<vmem>>, vector<8x1x32xf32>,
    %c0_i32 = arith.constant 0 : i32
    %11 = arith.subi %0, %c0_i32 : i32
    %c1_i32 = arith.constant 1 : i32
    %c1_i32_19 = arith.constant 1 : i32
    %12 = arith.subi %c1_i32, %c1_i32_19 : i32
    %13 = arith.addi %11, %12 : i32
    %c1_i32_20 = arith.constant 1 : i32
    %14 = arith.divsi %13, %c1_i32_20 : i32
    %c1_i32_21 = arith.constant 1 : i32
    %c0_i32_22 = arith.constant 0 : i32
    %c0_i32_23 = arith.constant 0 : i32
    %15 = arith.subi %14, %c0_i32_23 : i32
    %16 = arith.addi %c0_i32_23, %15 : i32
    %c1_i32_24 = arith.constant 1 : i32
    scf.for %arg16 = %c0_i32_23 to %16 step %c1_i32_24  : i32 {
      %17 = arith.muli %arg16, %c1_i32_21 : i32
      %18 = arith.addi %c0_i32_22, %17 : i32
      %c0_25 = arith.constant 0 : index
      %c0_26 = arith.constant 0 : index
      %19 = vector.load %arg12[%c0_25, %c0_26] : memref<1x32xf32, #tpu.memory_space<vmem>>, vector<1x32xf32>
      %20 = arith.index_cast %18 : i32 to index
      %c0_27 = arith.constant 0 : index
      %c0_28 = arith.constant 0 : index
      %21 = vector.load %arg3[%20, %c0_27, %c0_28] : memref<8x1x128xf32, #tpu.memory_space<vmem>>, vector<1x1x128xf32>
      %22 = vector.shape_cast %21 : vector<1x1x128xf32> to vector<1x128xf32>
      %c0_29 = arith.constant 0 : index
      %c0_30 = arith.constant 0 : index
      %23 = vector.load %arg8[%c0_29, %c0_30] : memref<32x128xf32, #tpu.memory_space<vmem>>, vector<32x128xf32>
      %cst_31 = arith.constant dense<0.000000e+00> : vector<1x128xf32>
      %24 = tpu.matmul %19, %23, %cst_31 {dimension_numbers = #tpu.dot_dimension_numbers<[1], [0], [0], [1], [0, 0, 1, 1], [], []>} : vector<1x32xf32>, vector<32x128xf32>, vector<1x128xf32> -> vector<1x128xf32>
      %25 = arith.addf %22, %24 : vector<1x128xf32>
      %26 = vector.extract_strided_slice %25 {offsets = [0, 0], sizes = [1, 96], strides = [1, 1]} : vector<1x128xf32> to vector<1x96xf32>
      %27 = arith.negf %26 : vector<1x96xf32>
      %28 = math.exp %27 : vector<1x96xf32>
      %cst_32 = arith.constant 1.000000e+00 : f32
      %29 = vector.broadcast %cst_32 : f32 to vector<1x96xf32>
      %30 = arith.addf %29, %28 : vector<1x96xf32>
      %31 = arith.divf %29, %30 : vector<1x96xf32>
      %32 = vector.extract_strided_slice %31 {offsets = [0, 0], sizes = [1, 32], strides = [1, 1]} : vector<1x96xf32> to vector<1x32xf32>
      %33 = vector.extract_strided_slice %31 {offsets = [0, 32], sizes = [1, 32], strides = [1, 1]} : vector<1x96xf32> to vector<1x32xf32>
      %34 = vector.extract_strided_slice %31 {offsets = [0, 64], sizes = [1, 32], strides = [1, 1]} : vector<1x96xf32> to vector<1x32xf32>
      %35 = vector.extract_strided_slice %25 {offsets = [0, 96], sizes = [1, 32], strides = [1, 1]} : vector<1x128xf32> to vector<1x32xf32>
      %36 = math.tanh %35 : vector<1x32xf32>
      %37 = arith.index_cast %18 : i32 to index
      %38 = memref.load %arg1[%37] : memref<8xi32, #tpu.memory_space<smem>>
      %c0_33 = arith.constant 0 : index
      %c0_34 = arith.constant 0 : index
      %39 = vector.load %arg13[%c0_33, %c0_34] : memref<1x32xf32, #tpu.memory_space<vmem>>, vector<1x32xf32>
      %40 = arith.mulf %32, %39 : vector<1x32xf32>
      %41 = arith.mulf %33, %36 : vector<1x32xf32>
      %42 = arith.addf %40, %41 : vector<1x32xf32>
      %c0_35 = arith.constant 0 : index
      %c0_36 = arith.constant 0 : index
      %43 = vector.load %arg13[%c0_35, %c0_36] : memref<1x32xf32, #tpu.memory_space<vmem>>, vector<1x32xf32>
      tpu.vector_store %arg13[%c0_35, %c0_36], %42 {strides = array<i32>} : memref<1x32xf32, #tpu.memory_space<vmem>>, vector<1x32xf32>,
      %c0_i32_37 = arith.constant 0 : i32
      %44 = arith.cmpi sgt, %38, %c0_i32_37 : i32
      %45 = arith.extui %44 : i1 to i32
      %c0_i32_38 = arith.constant 0 : i32
      %46 = arith.cmpi ne, %45, %c0_i32_38 : i32
      scf.if %46 {
        %64 = vector.shape_cast %33 : vector<1x32xf32> to vector<1x1x32xf32>
        %65 = vector.shape_cast %36 : vector<1x32xf32> to vector<1x1x32xf32>
        %66 = tpu.iota {dimensions = array<i32: 0>} : vector<8x1x32xi32>
        %67 = vector.broadcast %38 : i32 to vector<8x1x32xi32>
        %68 = arith.cmpi slt, %66, %67 : vector<8x1x32xi32>
        %c0_56 = arith.constant 0 : index
        %c0_57 = arith.constant 0 : index
        %c0_58 = arith.constant 0 : index
        %69 = vector.load %arg15[%c0_56, %c0_57, %c0_58] : memref<8x1x32xf32, #tpu.memory_space<vmem>>, vector<8x1x32xf32>
        %cst_59 = arith.constant -1.000000e+30 : f32
        %70 = vector.broadcast %cst_59 : f32 to vector<8x1x32xf32>
        %71 = arith.select %68, %69, %70 : vector<8x1x32xi1>, vector<8x1x32xf32>
        %cst_60 = arith.constant dense<0xFF800000> : vector<1x32xf32>
        %72 = vector.multi_reduction <maximumf>, %71, %cst_60 [0] : vector<8x1x32xf32> to vector<1x32xf32>
        %73 = vector.shape_cast %72 : vector<1x32xf32> to vector<1x1x32xf32>
        %74 = arith.maximumf %73, %64 : vector<1x1x32xf32>
        %75 = vector.broadcast %74 : vector<1x1x32xf32> to vector<8x1x32xf32>
        %76 = arith.subf %69, %75 : vector<8x1x32xf32>
        %77 = math.exp %76 : vector<8x1x32xf32>
        %cst_61 = arith.constant 0.000000e+00 : f32
        %78 = vector.broadcast %cst_61 : f32 to vector<8x1x32xf32>
        %79 = arith.select %68, %77, %78 : vector<8x1x32xi1>, vector<8x1x32xf32>
        %80 = arith.subf %64, %74 : vector<1x1x32xf32>
        %81 = math.exp %80 : vector<1x1x32xf32>
        %cst_62 = arith.constant dense<0.000000e+00> : vector<1x32xf32>
        %82 = vector.multi_reduction <add>, %79, %cst_62 [0] : vector<8x1x32xf32> to vector<1x32xf32>
        %83 = vector.shape_cast %82 : vector<1x32xf32> to vector<1x1x32xf32>
        %84 = arith.addf %81, %83 : vector<1x1x32xf32>
        %85 = arith.mulf %81, %65 : vector<1x1x32xf32>
        %c0_63 = arith.constant 0 : index
        %c0_64 = arith.constant 0 : index
        %c0_65 = arith.constant 0 : index
        %86 = vector.load %arg14[%c0_63, %c0_64, %c0_65] : memref<8x1x32xf32, #tpu.memory_space<vmem>>, vector<8x1x32xf32>
        %87 = arith.mulf %79, %86 : vector<8x1x32xf32>
        %cst_66 = arith.constant dense<0.000000e+00> : vector<1x32xf32>
        %88 = vector.multi_reduction <add>, %87, %cst_66 [0] : vector<8x1x32xf32> to vector<1x32xf32>
        %89 = vector.shape_cast %88 : vector<1x32xf32> to vector<1x1x32xf32>
        %90 = arith.addf %85, %89 : vector<1x1x32xf32>
        %91 = arith.divf %90, %84 : vector<1x1x32xf32>
        %92 = vector.shape_cast %91 : vector<1x1x32xf32> to vector<1x32xf32>
        %c0_67 = arith.constant 0 : index
        %c0_68 = arith.constant 0 : index
        %93 = vector.load %arg13[%c0_67, %c0_68] : memref<1x32xf32, #tpu.memory_space<vmem>>, vector<1x32xf32>
        tpu.vector_store %arg13[%c0_67, %c0_68], %92 {strides = array<i32>} : memref<1x32xf32, #tpu.memory_space<vmem>>, vector<1x32xf32>,
      } else {
      }
      %c0_39 = arith.constant 0 : index
      %c0_40 = arith.constant 0 : index
      %47 = vector.load %arg13[%c0_39, %c0_40] : memref<1x32xf32, #tpu.memory_space<vmem>>, vector<1x32xf32>
      %48 = math.tanh %47 : vector<1x32xf32>
      %49 = arith.mulf %34, %48 : vector<1x32xf32>
      %c0_41 = arith.constant 0 : index
      %c0_42 = arith.constant 0 : index
      %50 = vector.load %arg12[%c0_41, %c0_42] : memref<1x32xf32, #tpu.memory_space<vmem>>, vector<1x32xf32>
      tpu.vector_store %arg12[%c0_41, %c0_42], %49 {strides = array<i32>} : memref<1x32xf32, #tpu.memory_space<vmem>>, vector<1x32xf32>,
      %51 = vector.shape_cast %49 : vector<1x32xf32> to vector<1x1x32xf32>
      %52 = arith.index_cast %18 : i32 to index
      %c0_43 = arith.constant 0 : index
      %c0_44 = arith.constant 0 : index
      %53 = vector.load %arg11[%52, %c0_43, %c0_44] : memref<8x1x32xf32, #tpu.memory_space<vmem>>, vector<1x1x32xf32>
      tpu.vector_store %arg11[%52, %c0_43, %c0_44], %51 {strides = array<i32>} : memref<8x1x32xf32, #tpu.memory_space<vmem>>, vector<1x1x32xf32>,
      %54 = arith.index_cast %18 : i32 to index
      %55 = memref.load %arg2[%54] : memref<8xi32, #tpu.memory_space<smem>>
      %c0_45 = arith.constant 0 : index
      %c0_46 = arith.constant 0 : index
      %56 = vector.load %arg9[%c0_45, %c0_46] : memref<32x96xf32, #tpu.memory_space<vmem>>, vector<32x96xf32>
      %cst_47 = arith.constant dense<0.000000e+00> : vector<1x96xf32>
      %57 = tpu.matmul %49, %56, %cst_47 {dimension_numbers = #tpu.dot_dimension_numbers<[1], [0], [0], [1], [0, 0, 1, 1], [], []>} : vector<1x32xf32>, vector<32x96xf32>, vector<1x96xf32> -> vector<1x96xf32>
      %c0_i32_48 = arith.constant 0 : i32
      %58 = arith.subi %55, %c0_i32_48 : i32
      %c1_i32_49 = arith.constant 1 : i32
      %c1_i32_50 = arith.constant 1 : i32
      %59 = arith.subi %c1_i32_49, %c1_i32_50 : i32
      %60 = arith.addi %58, %59 : i32
      %c1_i32_51 = arith.constant 1 : i32
      %61 = arith.divsi %60, %c1_i32_51 : i32
      %c1_i32_52 = arith.constant 1 : i32
      %c0_i32_53 = arith.constant 0 : i32
      %c0_i32_54 = arith.constant 0 : i32
      %62 = arith.subi %61, %c0_i32_54 : i32
      %63 = arith.addi %c0_i32_54, %62 : i32
      %c1_i32_55 = arith.constant 1 : i32
      scf.for %arg17 = %c0_i32_54 to %63 step %c1_i32_55  : i32 {
        %64 = arith.muli %arg17, %c1_i32_52 : i32
        %65 = arith.addi %c0_i32_53, %64 : i32
        %66 = arith.addi %38, %65 : i32
        %67 = arith.index_cast %66 : i32 to index
        %c0_56 = arith.constant 0 : index
        %c0_57 = arith.constant 0 : index
        %68 = vector.load %arg4[%67, %c0_56, %c0_57] : memref<8x1x96xf32, #tpu.memory_space<vmem>>, vector<1x1x96xf32>
        %69 = vector.shape_cast %68 : vector<1x1x96xf32> to vector<1x96xf32>
        %70 = arith.addf %69, %57 : vector<1x96xf32>
        %71 = vector.extract_strided_slice %70 {offsets = [0, 0], sizes = [1, 64], strides = [1, 1]} : vector<1x96xf32> to vector<1x64xf32>
        %72 = arith.negf %71 : vector<1x64xf32>
        %73 = math.exp %72 : vector<1x64xf32>
        %cst_58 = arith.constant 1.000000e+00 : f32
        %74 = vector.broadcast %cst_58 : f32 to vector<1x64xf32>
        %75 = arith.addf %74, %73 : vector<1x64xf32>
        %76 = arith.divf %74, %75 : vector<1x64xf32>
        %77 = vector.extract_strided_slice %76 {offsets = [0, 0], sizes = [1, 32], strides = [1, 1]} : vector<1x64xf32> to vector<1x32xf32>
        %78 = vector.extract_strided_slice %76 {offsets = [0, 32], sizes = [1, 32], strides = [1, 1]} : vector<1x64xf32> to vector<1x32xf32>
        %79 = vector.extract_strided_slice %70 {offsets = [0, 64], sizes = [1, 32], strides = [1, 1]} : vector<1x96xf32> to vector<1x32xf32>
        %80 = math.tanh %79 : vector<1x32xf32>
        %81 = arith.mulf %77, %47 : vector<1x32xf32>
        %82 = arith.mulf %78, %80 : vector<1x32xf32>
        %83 = arith.addf %81, %82 : vector<1x32xf32>
        %84 = arith.index_cast %66 : i32 to index
        %c0_59 = arith.constant 0 : index
        %c0_60 = arith.constant 0 : index
        %85 = vector.load %arg5[%84, %c0_59, %c0_60] : memref<8x1x32xf32, #tpu.memory_space<vmem>>, vector<1x1x32xf32>
        %86 = vector.shape_cast %85 : vector<1x1x32xf32> to vector<1x32xf32>
        %c0_61 = arith.constant 0 : index
        %c0_62 = arith.constant 0 : index
        %87 = vector.load %arg10[%c0_61, %c0_62] : memref<32x32xf32, #tpu.memory_space<vmem>>, vector<32x32xf32>
        %cst_63 = arith.constant dense<0.000000e+00> : vector<1x32xf32>
        %88 = tpu.matmul %83, %87, %cst_63 {dimension_numbers = #tpu.dot_dimension_numbers<[1], [0], [0], [1], [0, 0, 1, 1], [], []>} : vector<1x32xf32>, vector<32x32xf32>, vector<1x32xf32> -> vector<1x32xf32>
        %89 = arith.addf %86, %88 : vector<1x32xf32>
        %90 = arith.negf %89 : vector<1x32xf32>
        %91 = math.exp %90 : vector<1x32xf32>
        %cst_64 = arith.constant 1.000000e+00 : f32
        %92 = vector.broadcast %cst_64 : f32 to vector<1x32xf32>
        %93 = arith.addf %92, %91 : vector<1x32xf32>
        %94 = arith.divf %92, %93 : vector<1x32xf32>
        %95 = vector.shape_cast %83 : vector<1x32xf32> to vector<1x1x32xf32>
        %96 = arith.index_cast %66 : i32 to index
        %c0_65 = arith.constant 0 : index
        %c0_66 = arith.constant 0 : index
        %97 = vector.load %arg14[%96, %c0_65, %c0_66] : memref<8x1x32xf32, #tpu.memory_space<vmem>>, vector<1x1x32xf32>
        tpu.vector_store %arg14[%96, %c0_65, %c0_66], %95 {strides = array<i32>} : memref<8x1x32xf32, #tpu.memory_space<vmem>>, vector<1x1x32xf32>,
        %98 = vector.shape_cast %94 : vector<1x32xf32> to vector<1x1x32xf32>
        %99 = arith.index_cast %66 : i32 to index
        %c0_67 = arith.constant 0 : index
        %c0_68 = arith.constant 0 : index
        %100 = vector.load %arg15[%99, %c0_67, %c0_68] : memref<8x1x32xf32, #tpu.memory_space<vmem>>, vector<1x1x32xf32>
        tpu.vector_store %arg15[%99, %c0_67, %c0_68], %98 {strides = array<i32>} : memref<8x1x32xf32, #tpu.memory_space<vmem>>, vector<1x1x32xf32>,
      }
    }
    return
  }
}

</mosaic_0001>

<llo_original>
// kernel: tpu_custom_call.1
$region0: #{tpu_custom_call.1}
  #allocation0 [shape = 'u32[]', space=smem, size = 0x4, offset = 0x4, fixed_abs, tag = 'smem constant byte address 0x4 - core index']
  #allocation1 [shape = 'u32[144,128]{1,0:T(1,128)}', space=vmem, size = 0x12000, scoped, tag = 'internal scratch']
  #allocation2 [shape = 'f32[1,32]{1,0:T(1,128)}', space=vmem, size = 0x200, scoped, tag = 'scratch operand']
  #allocation3 [shape = 'f32[1,32]{1,0:T(1,128)}', space=vmem, size = 0x200, scoped, tag = 'scratch operand']
  #allocation4 [shape = 'f32[8,1,32]{2,1,0:T(1,128)}', space=vmem, size = 0x1000, scoped, tag = 'scratch operand']
  #allocation5 [shape = 'f32[8,1,32]{2,1,0:T(1,128)}', space=vmem, size = 0x1000, scoped, tag = 'scratch operand']
  #allocation6 [shape = 's32[1]{0:T(128)S(6)}', space=smem, size = 0x200, scoped, tag = 'scoped memory for tpu_custom_call.1']
  %s0 = inlined_call_operand.<no memory space> [shape: s32[1], index: 0, kind: input, shape index: {}]
  %s1 = inlined_call_operand.vmem [shape: s32[8], index: 1, kind: input, shape index: {}]
  %s2 = inlined_call_operand.hbm [shape: s32[8], index: 2, kind: input, shape index: {}]
  %s3 = inlined_call_operand.hbm [shape: f32[8,1,128], index: 3, kind: input, shape index: {}]
  %s4 = inlined_call_operand.hbm [shape: f32[8,1,96], index: 4, kind: input, shape index: {}]
  %s5 = inlined_call_operand.vmem [shape: f32[8,1,32], index: 5, kind: input, shape index: {}]
  %s6 = inlined_call_operand.vmem [shape: f32[1,32], index: 6, kind: input, shape index: {}]
  %s7 = inlined_call_operand.vmem [shape: f32[1,32], index: 7, kind: input, shape index: {}]
  %s8 = inlined_call_operand.hbm [shape: f32[32,128], index: 8, kind: input, shape index: {}]
  %s9 = inlined_call_operand.hbm [shape: f32[32,96], index: 9, kind: input, shape index: {}]
  %s10 = inlined_call_operand.hbm [shape: f32[32,32], index: 10, kind: input, shape index: {}]
  %s11 = inlined_call_operand.hbm [shape: f32[8,1,32], index: 11, kind: output, shape index: {}]
  %s12 = sld [smem:[#allocation0]]
  $region100: #{tpu_custom_call.1} parent=0
    _
  %s14 = ssub.s32 1, %s12
  %s15 = scalar_select 0, %s14, %s12
  %16 = sst [smem:[#allocation6]] %s0
  $region1: #{tpu_custom_call.1} parent=0
    #allocation7 [shape = 'u8[512]{0}', space=smem, size = 0x200, scoped, tag = 'input window, operand 1, single buffered']
    #allocation8 [shape = 's32[1]{0}', space=sflag, size = 0x4, scoped, tag = 'scoped memory for tpu_custom_call.1']
    #allocation9 [shape = 's32[1]{0}', space=sflag, size = 0x4, scoped, tag = 'scoped memory for tpu_custom_call.1']
    #allocation10 [shape = 's32[1]{0}', space=sflag, size = 0x4, scoped, tag = 'scoped memory for tpu_custom_call.1']
    #allocation11 [shape = 's32[1]{0}', space=sflag, size = 0x4, scoped, tag = 'scoped memory for tpu_custom_call.1']
    #allocation12 [shape = 'u8[512]{0}', space=smem, size = 0x200, scoped, tag = 'input window, operand 2, single buffered']
    #allocation13 [shape = 'u8[4096]{0}', space=vmem, size = 0x1000, scoped, tag = 'input window, operand 3, single buffered']
    #allocation14 [shape = 'u8[4096]{0}', space=vmem, size = 0x1000, scoped, tag = 'input window, operand 4, single buffered']
    #allocation15 [shape = 's32[1]{0}', space=sflag, size = 0x4, scoped, tag = 'scoped memory for tpu_custom_call.1']
    #allocation16 [shape = 'u8[16384]{0}', space=vmem, size = 0x4000, scoped, tag = 'input window, operand 8, single buffered']
    #allocation17 [shape = 'u8[16384]{0}', space=vmem, size = 0x4000, scoped, tag = 'input window, operand 9, single buffered']
    #allocation18 [shape = 's32[1]{0}', space=sflag, size = 0x4, scoped, tag = 'scoped memory for tpu_custom_call.1']
    #allocation19 [shape = 'u8[16384]{0}', space=vmem, size = 0x4000, scoped, tag = 'input window, operand 10, single buffered']
    #allocation20 [shape = 'u8[4096]{0}', space=vmem, size = 0x1000, scoped, tag = 'output window, operand 0, single buffered']
    %17 = vsyncpa [#allocation11], 0
    %18 = vsyncpa [#allocation10], 0
    %19 = vsyncpa [#allocation8], 0
    %20 = vsyncpa [#allocation15], 0
    %21 = vsyncpa [#allocation18], 0
    %22 = vsyncpa [#allocation9], 0
    // Predicated region
    $region2: #{tpu_custom_call.1} parent=1 // pred_check
      _
    $region3: #{tpu_custom_call.1} parent=1 // pred_check_branch
      %24 = sbr.rel (0) target = $region5
    $region4: #{tpu_custom_call.1} parent=1 // pred_region
      _
    $region5: #{tpu_custom_call.1} parent=1 // pred_fallthru
      _
    // Predicated region
    $region6: #{tpu_custom_call.1} parent=1 // pred_check
      _
    $region7: #{tpu_custom_call.1} parent=1 // pred_check_branch
      %26 = sbr.rel (0) target = $region9
    $region8: #{tpu_custom_call.1} parent=1 // pred_region
      %s28 = ssub.s32 16, 16
      %29 = vsyncadd [#allocation11], %s28
      %s31 = sshll.u32 %s1, 4
      %s32 = int_to_ptr.vmem [resolvable:$true] %s31
      %34 = dma.vmem_to_smem %s32, 16, [#allocation7], [#allocation11]
    $region9: #{tpu_custom_call.1} parent=1 // pred_fallthru
      _
    // Predicated region
    $region10: #{tpu_custom_call.1} parent=1 // pred_check
      _
    $region11: #{tpu_custom_call.1} parent=1 // pred_check_branch
      %36 = sbr.rel (0) target = $region13
    $region12: #{tpu_custom_call.1} parent=1 // pred_region
      %s38 = ssub.s32 16, 16
      %39 = vsyncadd [#allocation10], %s38
      %42 = dma.hbm_to_smem %s2, 16, [#allocation12], [#allocation10]
    $region13: #{tpu_custom_call.1} parent=1 // pred_fallthru
      _
    // Predicated region
    $region14: #{tpu_custom_call.1} parent=1 // pred_check
      _
    $region15: #{tpu_custom_call.1} parent=1 // pred_check_branch
      %44 = sbr.rel (0) target = $region17
    $region16: #{tpu_custom_call.1} parent=1 // pred_region
      %s46 = ssub.s32 128, 128
      %47 = vsyncadd [#allocation8], %s46
      %s48 = sshll.u32 [#allocation13], 4
      %s49 = int_to_ptr.vmem [resolvable:$true] %s48
      %54 = dma.hbm_to_vmem [thread:$0]  %s3, 128, %s49, [#allocation8], 16, 16, 1
    $region17: #{tpu_custom_call.1} parent=1 // pred_fallthru
      _
    // Predicated region
    $region18: #{tpu_custom_call.1} parent=1 // pred_check
      _
    $region19: #{tpu_custom_call.1} parent=1 // pred_check_branch
      %56 = sbr.rel (0) target = $region21
    $region20: #{tpu_custom_call.1} parent=1 // pred_region
      %s58 = ssub.s32 128, 128
      %59 = vsyncadd [#allocation15], %s58
      %s60 = sshll.u32 [#allocation14], 4
      %s61 = int_to_ptr.vmem [resolvable:$true] %s60
      %66 = dma.hbm_to_vmem [thread:$0]  %s4, 128, %s61, [#allocation15], 16, 16, 1
    $region21: #{tpu_custom_call.1} parent=1 // pred_fallthru
      _
    // Predicated region
    $region22: #{tpu_custom_call.1} parent=1 // pred_check
      _
    $region23: #{tpu_custom_call.1} parent=1 // pred_check_branch
      %68 = sbr.rel (0) target = $region25
    $region24: #{tpu_custom_call.1} parent=1 // pred_region
      _
    $region25: #{tpu_custom_call.1} parent=1 // pred_fallthru
      _
    // Predicated region
    $region26: #{tpu_custom_call.1} parent=1 // pred_check
      _
    $region27: #{tpu_custom_call.1} parent=1 // pred_check_branch
      %70 = sbr.rel (0) target = $region29
    $region28: #{tpu_custom_call.1} parent=1 // pred_region
      _
    $region29: #{tpu_custom_call.1} parent=1 // pred_fallthru
      _
    // Predicated region
    $region30: #{tpu_custom_call.1} parent=1 // pred_check
      _
    $region31: #{tpu_custom_call.1} parent=1 // pred_check_branch
      %72 = sbr.rel (0) target = $region33
    $region32: #{tpu_custom_call.1} parent=1 // pred_region
      _
    $region33: #{tpu_custom_call.1} parent=1 // pred_fallthru
      _
    // Predicated region
    $region34: #{tpu_custom_call.1} parent=1 // pred_check
      _
    $region35: #{tpu_custom_call.1} parent=1 // pred_check_branch
      %74 = sbr.rel (0) target = $region37
    $region36: #{tpu_custom_call.1} parent=1 // pred_region
      %s76 = ssub.s32 512, 512
      %77 = vsyncadd [#allocation15], %s76
      %s78 = sshll.u32 [#allocation16], 4
      %s79 = int_to_ptr.vmem [resolvable:$true] %s78
      %84 = dma.hbm_to_vmem [thread:$0]  %s8, 512, %s79, [#allocation15], 128, 128, 8
    $region37: #{tpu_custom_call.1} parent=1 // pred_fallthru
      _
    // Predicated region
    $region38: #{tpu_custom_call.1} parent=1 // pred_check
      _
    $region39: #{tpu_custom_call.1} parent=1 // pred_check_branch
      %86 = sbr.rel (0) target = $region41
    $region40: #{tpu_custom_call.1} parent=1 // pred_region
      %s88 = ssub.s32 512, 512
      %89 = vsyncadd [#allocation18], %s88
      %s90 = sshll.u32 [#allocation17], 4
      %s91 = int_to_ptr.vmem [resolvable:$true] %s90
      %96 = dma.hbm_to_vmem [thread:$0]  %s9, 512, %s91, [#allocation18], 128, 128, 8
    $region41: #{tpu_custom_call.1} parent=1 // pred_fallthru
      _
    // Predicated region
    $region42: #{tpu_custom_call.1} parent=1 // pred_check
      _
    $region43: #{tpu_custom_call.1} parent=1 // pred_check_branch
      %98 = sbr.rel (0) target = $region45
    $region44: #{tpu_custom_call.1} parent=1 // pred_region
      %s100 = ssub.s32 512, 512
      %101 = vsyncadd [#allocation18], %s100
      %s102 = sshll.u32 [#allocation19], 4
      %s103 = int_to_ptr.vmem [resolvable:$true] %s102
      %108 = dma.hbm_to_vmem [thread:$0]  %s10, 512, %s103, [#allocation18], 128, 128, 8
    $region45: #{tpu_custom_call.1} parent=1 // pred_fallthru
      _
    // Predicated region
    $region46: #{tpu_custom_call.1} parent=1 // pred_check
      _
    $region47: #{tpu_custom_call.1} parent=1 // pred_check_branch
      %110 = sbr.rel (0) target = $region49
    $region48: #{tpu_custom_call.1} parent=1 // pred_region
      %111 = dma.done [#allocation11], 16
    $region49: #{tpu_custom_call.1} parent=1 // pred_fallthru
      _
    // Predicated region
    $region50: #{tpu_custom_call.1} parent=1 // pred_check
      _
    $region51: #{tpu_custom_call.1} parent=1 // pred_check_branch
      %113 = sbr.rel (0) target = $region53
    $region52: #{tpu_custom_call.1} parent=1 // pred_region
      %114 = dma.done [#allocation10], 16
    $region53: #{tpu_custom_call.1} parent=1 // pred_fallthru
      _
    // Predicated region
    $region54: #{tpu_custom_call.1} parent=1 // pred_check
      _
    $region55: #{tpu_custom_call.1} parent=1 // pred_check_branch
      %116 = sbr.rel (0) target = $region57
    $region56: #{tpu_custom_call.1} parent=1 // pred_region
      %117 = dma.done [#allocation8], 128
    $region57: #{tpu_custom_call.1} parent=1 // pred_fallthru
      _
    // Predicated region
    $region58: #{tpu_custom_call.1} parent=1 // pred_check
      _
    $region59: #{tpu_custom_call.1} parent=1 // pred_check_branch
      %119 = sbr.rel (0) target = $region61
    $region60: #{tpu_custom_call.1} parent=1 // pred_region
      %120 = dma.done [#allocation15], 128
    $region61: #{tpu_custom_call.1} parent=1 // pred_fallthru
      _
    // Predicated region
    $region62: #{tpu_custom_call.1} parent=1 // pred_check
      _
    $region63: #{tpu_custom_call.1} parent=1 // pred_check_branch
      %122 = sbr.rel (0) target = $region65
    $region64: #{tpu_custom_call.1} parent=1 // pred_region
      %123 = dma.done [#allocation15], 512
    $region65: #{tpu_custom_call.1} parent=1 // pred_fallthru
      _
    // Predicated region
    $region66: #{tpu_custom_call.1} parent=1 // pred_check
      _
    $region67: #{tpu_custom_call.1} parent=1 // pred_check_branch
      %125 = sbr.rel (0) target = $region69
    $region68: #{tpu_custom_call.1} parent=1 // pred_region
      %126 = dma.done [#allocation18], 512
    $region69: #{tpu_custom_call.1} parent=1 // pred_fallthru
      _
    // Predicated region
    $region70: #{tpu_custom_call.1} parent=1 // pred_check
      _
    $region71: #{tpu_custom_call.1} parent=1 // pred_check_branch
      %128 = sbr.rel (0) target = $region73
    $region72: #{tpu_custom_call.1} parent=1 // pred_region
      %129 = dma.done [#allocation18], 512
    $region73: #{tpu_custom_call.1} parent=1 // pred_fallthru
      _
    %130 = sfence
    %s131 = sld [smem:[#allocation6]]
    %v132 = vld [vmem:[%s6] sm:$0x1]
    %vm133 = vcmask 253952
    %134 = vst.msk [vmem:[#allocation2] sm:$0x1] %vm133, %v132
    %v135 = vld [vmem:[%s7] sm:$0x1]
    %136 = vst.msk [vmem:[#allocation3] sm:$0x1] %vm133, %v135
    %137 = vst.msk [vmem:[#allocation4] sm:$0x1] %vm133, 0.0
    %138 = vst.msk [vmem:[#allocation4 + $0x1] sm:$0x1] %vm133, 0.0
    %139 = vst.msk [vmem:[#allocation4 + $0x2] sm:$0x1] %vm133, 0.0
    %140 = vst.msk [vmem:[#allocation4 + $0x3] sm:$0x1] %vm133, 0.0
    %141 = vst.msk [vmem:[#allocation4 + $0x4] sm:$0x1] %vm133, 0.0
    %142 = vst.msk [vmem:[#allocation4 + $0x5] sm:$0x1] %vm133, 0.0
    %143 = vst.msk [vmem:[#allocation4 + $0x6] sm:$0x1] %vm133, 0.0
    %144 = vst.msk [vmem:[#allocation4 + $0x7] sm:$0x1] %vm133, 0.0
    %145 = vst.msk [vmem:[#allocation5] sm:$0x1] %vm133, 0.0
    %146 = vst.msk [vmem:[#allocation5 + $0x1] sm:$0x1] %vm133, 0.0
    %147 = vst.msk [vmem:[#allocation5 + $0x2] sm:$0x1] %vm133, 0.0
    %148 = vst.msk [vmem:[#allocation5 + $0x3] sm:$0x1] %vm133, 0.0
    %149 = vst.msk [vmem:[#allocation5 + $0x4] sm:$0x1] %vm133, 0.0
    %150 = vst.msk [vmem:[#allocation5 + $0x5] sm:$0x1] %vm133, 0.0
    %151 = vst.msk [vmem:[#allocation5 + $0x6] sm:$0x1] %vm133, 0.0
    %152 = vst.msk [vmem:[#allocation5 + $0x7] sm:$0x1] %vm133, 0.0
    %153 = vst.msk [vmem:[#allocation20] sm:$0x1] %vm133, 0.0
    %154 = vst.msk [vmem:[#allocation20 + $0x1] sm:$0x1] %vm133, 0.0
    %155 = vst.msk [vmem:[#allocation20 + $0x2] sm:$0x1] %vm133, 0.0
    %156 = vst.msk [vmem:[#allocation20 + $0x3] sm:$0x1] %vm133, 0.0
    %157 = vst.msk [vmem:[#allocation20 + $0x4] sm:$0x1] %vm133, 0.0
    %158 = vst.msk [vmem:[#allocation20 + $0x5] sm:$0x1] %vm133, 0.0
    %159 = vst.msk [vmem:[#allocation20 + $0x6] sm:$0x1] %vm133, 0.0
    %160 = vst.msk [vmem:[#allocation20 + $0x7] sm:$0x1] %vm133, 0.0
    // While loop
    $region74: #{tpu_custom_call.1} parent=1 // loop_pre_header
      _
    $region75: #{tpu_custom_call.1} parent=1 // loop_header
      %s162 = sphi 0, %s164
      %p163 = scmp.ge.s32.totalorder %s162, %s131
    $region76: #{tpu_custom_call.1} parent=1 // loop_header_branch
      %166 = sbr.rel (%p163) target = $region80
    $region77: #{tpu_custom_call.1} parent=1 // loop_body
      %v167 = vld [vmem:[#allocation2] sm:$0x1]
      %s168 = scalar_lea.vmem [#allocation13], %s162
      %v169 = vld [vmem:[%s168] sm:$0x1]
      %v170 = vld [vmem:[#allocation16] sm:$0xff]
      %v171 = vld [vmem:[#allocation16 + $0x8] sm:$0xff]
      %v172 = vld [vmem:[#allocation16 + $0x10] sm:$0xff]
      %v173 = vld [vmem:[#allocation16 + $0x18] sm:$0xff]
      %vm174 = vcmask 261120
      %v176 = vsel %vm174, %v167, 0
      %178 = vmatprep.subr.mxu0 0.0
      %179 = vmatpush1.msra.mxu0 0.0
      %180 = vmatprep.subr.mxu0 0.0
      %181 = vmatpush1.msra.mxu0 0.0
      %182 = vmatprep.subr.mxu0 0.0
      %183 = vmatpush1.msra.mxu0 0.0
      %184 = vmatprep.subr.mxu0 0.0
      %185 = vmatpush1.msra.mxu0 0.0
      %186 = vmatprep.subr.mxu0 0.0
      %187 = vmatpush1.msra.mxu0 0.0
      %188 = vmatprep.subr.mxu0 0.0
      %189 = vmatpush1.msra.mxu0 0.0
      %190 = vmatprep.subr.mxu0 0.0
      %191 = vmatpush1.msra.mxu0 0.0
      %192 = vmatprep.subr.mxu0 0.0
      %193 = vmatpush1.msra.mxu0 0.0
      %194 = vmatprep.subr.mxu0 0.0
      %195 = vmatpush1.msra.mxu0 0.0
      %196 = vmatprep.subr.mxu0 0.0
      %197 = vmatpush1.msra.mxu0 0.0
      %198 = vmatprep.subr.mxu0 0.0
      %199 = vmatpush1.msra.mxu0 0.0
      %200 = vmatprep.subr.mxu0 0.0
      %201 = vmatpush1.msra.mxu0 0.0
      %202 = vmatprep.subr.mxu0 0.0
      %203 = vmatpush1.msra.mxu0 %v173
      %204 = vmatprep.subr.mxu0 0.0
      %205 = vmatpush1.msra.mxu0 %v172
      %206 = vmatprep.subr.mxu0 0.0
      %207 = vmatpush1.msra.mxu0 %v171
      %208 = vmatprep.subr.mxu0 0.0
      %209 = vmatpush1.msra.mxu0 %v170
      %210 = vmatprep.subr.mxu0 0.0
      %211 = vmatpush2.msra.mxu0 0.0
      %212 = vmatprep.subr.mxu0 0.0
      %213 = vmatpush2.msra.mxu0 0.0
      %214 = vmatprep.subr.mxu0 0.0
      %215 = vmatpush2.msra.mxu0 0.0
      %216 = vmatprep.subr.mxu0 0.0
      %217 = vmatpush2.msra.mxu0 0.0
      %218 = vmatprep.subr.mxu0 0.0
      %219 = vmatpush2.msra.mxu0 0.0
      %220 = vmatprep.subr.mxu0 0.0
      %221 = vmatpush2.msra.mxu0 0.0
      %222 = vmatprep.subr.mxu0 0.0
      %223 = vmatpush2.msra.mxu0 0.0
      %224 = vmatprep.subr.mxu0 0.0
      %225 = vmatpush2.msra.mxu0 0.0
      %226 = vmatprep.subr.mxu0 0.0
      %227 = vmatpush2.msra.mxu0 0.0
      %228 = vmatprep.subr.mxu0 0.0
      %229 = vmatpush2.msra.mxu0 0.0
      %230 = vmatprep.subr.mxu0 0.0
      %231 = vmatpush2.msra.mxu0 0.0
      %232 = vmatprep.subr.mxu0 0.0
      %233 = vmatpush2.msra.mxu0 0.0
      %234 = vmatprep.subr.mxu0 0.0
      %235 = vmatpush2.msra.mxu0 0.0
      %236 = vmatprep.subr.mxu0 0.0
      %237 = vmatpush2.msra.mxu0 0.0
      %238 = vmatprep.subr.mxu0 0.0
      %239 = vmatpush2.msra.mxu0 0.0
      %240 = vmatprep.subr.mxu0 0.0
      %241 = vmatpush2.msra.mxu0 0.0
      %242 = vmatprep.mubr.f32.mxu0 0.0
      %243 = vmatmul.mubr.f32.gmra.mxu0 %v176
      %v244 = vpop.f32.mrf.mxu0
      %v245 = vadd.f32 0.0, %v244
      %v246 = vpop.f32.mrf.mxu0
      %247 = vdwg.mxu0
      %v248 = vadd.f32 %v169, %v245
      %v249 = vxor.u32 %v248, 2147483648
      %v250 = vmul.f32 %v249, 1.442695
      %v251 = vpow.pop %v250
      %v252 = vadd.f32 %v251, 1.0
      %v253 = vrcp.pop %v252
      %v254 = vmul.f32 1.0, %v253
      %v255 = vtanh.pop %v248
      %s256 = sld [smem:[#allocation7 + %s162]]
      %v257 = vld [vmem:[#allocation3] sm:$0x1]
      %v258 = vmul.f32 %v254, %v257
      %260 = vrot.lane.b32.xlu0 %v255, 64
      %v261 = vpop.permute.xlu0 %260
      %v263 = vmul.f32 %v254, %v261
      %265 = vrot.lane.b32.xlu0 %v263, 96
      %v266 = vpop.permute.xlu0 %265
      %v268 = vadd.f32 %v258, %v266
      %269 = vst.msk [vmem:[#allocation3] sm:$0x1] %vm133, %v268
      %p270 = scmp.gt.s32.totalorder %s256, 0
      // Predicated region
      $region81: #{tpu_custom_call.1} parent=77 // pred_check
        %p271 = pneg %p270
      $region82: #{tpu_custom_call.1} parent=77 // pred_check_branch
        %273 = sbr.rel (%p271) target = $region84
      $region83: #{tpu_custom_call.1} parent=77 // pred_region
        %v274 = vstv %s256
        %vm275 = vcmp.gt.s32.totalorder %v274, 0
        %vm276 = vcmp.gt.s32.totalorder %v274, 1
        %vm277 = vcmp.gt.s32.totalorder %v274, 2
        %vm278 = vcmp.gt.s32.totalorder %v274, 3
        %vm279 = vcmp.gt.s32.totalorder %v274, 4
        %vm280 = vcmp.gt.s32.totalorder %v274, 5
        %vm281 = vcmp.gt.s32.totalorder %v274, 6
        %vm282 = vcmp.gt.s32.totalorder %v274, 7
        %v283 = vld [vmem:[#allocation5] sm:$0x1]
        %v284 = vld [vmem:[#allocation5 + $0x1] sm:$0x1]
        %v285 = vld [vmem:[#allocation5 + $0x2] sm:$0x1]
        %v286 = vld [vmem:[#allocation5 + $0x3] sm:$0x1]
        %v287 = vld [vmem:[#allocation5 + $0x4] sm:$0x1]
        %v288 = vld [vmem:[#allocation5 + $0x5] sm:$0x1]
        %v289 = vld [vmem:[#allocation5 + $0x6] sm:$0x1]
        %v290 = vld [vmem:[#allocation5 + $0x7] sm:$0x1]
        %v291 = vsel %vm275, %v283, -1e+30
        %v292 = vsel %vm276, %v284, -1e+30
        %v293 = vsel %vm277, %v285, -1e+30
        %v294 = vsel %vm278, %v286, -1e+30
        %v295 = vsel %vm279, %v287, -1e+30
        %v296 = vsel %vm280, %v288, -1e+30
        %v297 = vsel %vm281, %v289, -1e+30
        %v298 = vsel %vm282, %v290, -1e+30
        %v299 = vlaneseq
        %vm300 = vcmp.ge.s32.totalorder %v299, 0
        %vm301 = vcmp.lt.s32.totalorder %v299, 32
        %vm302 = vmand %vm300, %vm301
        %v303 = vsel %vm302, %v291, -inf
        %v304 = vsel %vm302, %v292, -inf
        %v305 = vsel %vm302, %v293, -inf
        %v306 = vsel %vm302, %v294, -inf
        %v307 = vsel %vm302, %v295, -inf
        %v308 = vmax.f32 %v303, %v307
        %v309 = vsel %vm302, %v296, -inf
        %v310 = vmax.f32 %v304, %v309
        %v311 = vsel %vm302, %v297, -inf
        %v312 = vmax.f32 %v305, %v311
        %v313 = vsel %vm302, %v298, -inf
        %v314 = vmax.f32 %v306, %v313
        %v315 = vmax.f32 %v308, %v310
        %v316 = vmax.f32 %v312, %v314
        %v317 = vmax.f32 %v315, %v316
        %319 = vrot.lane.b32.xlu0 %v254, 96
        %v320 = vpop.permute.xlu0 %319
        %v322 = vmax.f32 %v317, %v320
        %v323 = vsub.f32 %v283, %v322
        %v324 = vsub.f32 %v284, %v322
        %v325 = vsub.f32 %v285, %v322
        %v326 = vsub.f32 %v286, %v322
        %v327 = vsub.f32 %v287, %v322
        %v328 = vsub.f32 %v288, %v322
        %v329 = vsub.f32 %v289, %v322
        %v330 = vsub.f32 %v290, %v322
        %v331 = vmul.f32 %v323, 1.442695
        %v332 = vpow.pop %v331
        %v333 = vmul.f32 %v324, 1.442695
        %v334 = vpow.pop %v333
        %v335 = vmul.f32 %v325, 1.442695
        %v336 = vpow.pop %v335
        %v337 = vmul.f32 %v326, 1.442695
        %v338 = vpow.pop %v337
        %v339 = vmul.f32 %v327, 1.442695
        %v340 = vpow.pop %v339
        %v341 = vmul.f32 %v328, 1.442695
        %v342 = vpow.pop %v341
        %v343 = vmul.f32 %v329, 1.442695
        %v344 = vpow.pop %v343
        %v345 = vmul.f32 %v330, 1.442695
        %v346 = vpow.pop %v345
        %v347 = vsel %vm275, %v332, 0.0
        %v348 = vsel %vm276, %v334, 0.0
        %v349 = vsel %vm277, %v336, 0.0
        %v350 = vsel %vm278, %v338, 0.0
        %v351 = vsel %vm279, %v340, 0.0
        %v352 = vsel %vm280, %v342, 0.0
        %v353 = vsel %vm281, %v344, 0.0
        %v354 = vsel %vm282, %v346, 0.0
        %356 = vrot.lane.b32.xlu0 %v322, 32
        %v357 = vpop.permute.xlu0 %356
        %v359 = vsub.f32 %v254, %v357
        %v360 = vmul.f32 %v359, 1.442695
        %v361 = vpow.pop %v360
        %v362 = vsel %vm133, %v347, 0.0
        %v363 = vsel %vm133, %v348, 0.0
        %v364 = vadd.f32 %v362, %v363
        %v365 = vsel %vm133, %v349, 0.0
        %v366 = vadd.f32 %v364, %v365
        %v367 = vsel %vm133, %v350, 0.0
        %v368 = vadd.f32 %v366, %v367
        %v369 = vsel %vm133, %v351, 0.0
        %v370 = vadd.f32 %v368, %v369
        %v371 = vsel %vm133, %v352, 0.0
        %v372 = vadd.f32 %v370, %v371
        %v373 = vsel %vm133, %v353, 0.0
        %v374 = vadd.f32 %v372, %v373
        %v375 = vsel %vm133, %v354, 0.0
        %v376 = vadd.f32 %v374, %v375
        %v379 = vunpack.c.l.s4 1966171168
        %v380 = vunpack.c.0.s8 %v379
        %v381 = vlaneseq
        %v382 = vshrl.u32 %v381, 7
        %v383 = vsub.s32 %v380, %v382
        %v384 = vrot.slane %v376, %v383
        %v386 = vunpack.c.l.s4 1966171168
        %v387 = vunpack.c.0.s8 %v386
        %v388 = vlaneseq
        %v389 = vshrl.u32 %v388, 7
        %v390 = vsub.s32 %v387, %v389
        %v391 = vrot.slane %v384, %v390
        %392 = vrot.lane.b32.xlu0 %v391, 32
        %v393 = vpop.permute.xlu0 %392
        %v395 = vadd.f32 %v361, %v393
        %v396 = vmul.f32 %v361, %v261
        %v397 = vld [vmem:[#allocation4] sm:$0x1]
        %v398 = vld [vmem:[#allocation4 + $0x1] sm:$0x1]
        %v399 = vld [vmem:[#allocation4 + $0x2] sm:$0x1]
        %v400 = vld [vmem:[#allocation4 + $0x3] sm:$0x1]
        %v401 = vld [vmem:[#allocation4 + $0x4] sm:$0x1]
        %v402 = vld [vmem:[#allocation4 + $0x5] sm:$0x1]
        %v403 = vld [vmem:[#allocation4 + $0x6] sm:$0x1]
        %v404 = vld [vmem:[#allocation4 + $0x7] sm:$0x1]
        %v405 = vmul.f32 %v347, %v397
        %v406 = vmul.f32 %v348, %v398
        %v407 = vmul.f32 %v349, %v399
        %v408 = vmul.f32 %v350, %v400
        %v409 = vmul.f32 %v351, %v401
        %v410 = vmul.f32 %v352, %v402
        %v411 = vmul.f32 %v353, %v403
        %v412 = vmul.f32 %v354, %v404
        %v413 = vsel %vm133, %v405, 0.0
        %v414 = vsel %vm133, %v406, 0.0
        %v415 = vadd.f32 %v413, %v414
        %v416 = vsel %vm133, %v407, 0.0
        %v417 = vadd.f32 %v415, %v416
        %v418 = vsel %vm133, %v408, 0.0
        %v419 = vadd.f32 %v417, %v418
        %v420 = vsel %vm133, %v409, 0.0
        %v421 = vadd.f32 %v419, %v420
        %v422 = vsel %vm133, %v410, 0.0
        %v423 = vadd.f32 %v421, %v422
        %v424 = vsel %vm133, %v411, 0.0
        %v425 = vadd.f32 %v423, %v424
        %v426 = vsel %vm133, %v412, 0.0
        %v427 = vadd.f32 %v425, %v426
        %v430 = vunpack.c.l.s4 1966171168
        %v431 = vunpack.c.0.s8 %v430
        %v432 = vlaneseq
        %v433 = vshrl.u32 %v432, 7
        %v434 = vsub.s32 %v431, %v433
        %v435 = vrot.slane %v427, %v434
        %v437 = vunpack.c.l.s4 1966171168
        %v438 = vunpack.c.0.s8 %v437
        %v439 = vlaneseq
        %v440 = vshrl.u32 %v439, 7
        %v441 = vsub.s32 %v438, %v440
        %v442 = vrot.slane %v435, %v441
        %443 = vrot.lane.b32.xlu0 %v442, 32
        %v444 = vpop.permute.xlu0 %443
        %v446 = vadd.f32 %v396, %v444
        %v447 = vrcp.pop %v395
        %v448 = vmul.f32 %v446, %v447
        %v450 = vlaneseq
        %v451 = vshrl.u32 %v450, 7
        %v452 = vsub.s32 0, %v451
        %v453 = vrot.slane %v448, %v452
        %454 = vrot.lane.b32.xlu0 %v453, 96
        %v455 = vpop.permute.xlu0 %454
        %457 = vst.msk [vmem:[#allocation3] sm:$0x1] %vm133, %v455
      $region84: #{tpu_custom_call.1} parent=77 // pred_fallthru
        _
      %v458 = vld [vmem:[#allocation3] sm:$0x1]
      %v459 = vtanh.pop %v458
      %461 = vrot.lane.b32.xlu0 %v459, 64
      %v462 = vpop.permute.xlu0 %461
      %v464 = vmul.f32 %v254, %v462
      %v466 = vlaneseq
      %v467 = vshrl.u32 %v466, 7
      %v468 = vsub.s32 0, %v467
      %v469 = vrot.slane %v464, %v468
      %470 = vrot.lane.b32.xlu0 %v469, 64
      %v471 = vpop.permute.xlu0 %470
      %473 = vst.msk [vmem:[#allocation2] sm:$0x1] %vm133, %v471
      %s474 = scalar_lea.vmem [#allocation20], %s162
      %475 = vst.msk [vmem:[%s474] sm:$0x1] %vm133, %v471
      %s476 = sld [smem:[#allocation12 + %s162]]
      %v477 = vld [vmem:[#allocation17] sm:$0xff]
      %v478 = vld [vmem:[#allocation17 + $0x8] sm:$0xff]
      %v479 = vld [vmem:[#allocation17 + $0x10] sm:$0xff]
      %v480 = vld [vmem:[#allocation17 + $0x18] sm:$0xff]
      %v481 = vsel %vm174, %v471, 0
      %483 = vmatprep.subr.mxu0 0.0
      %484 = vmatpush1.msra.mxu0 0.0
      %485 = vmatprep.subr.mxu0 0.0
      %486 = vmatpush1.msra.mxu0 0.0
      %487 = vmatprep.subr.mxu0 0.0
      %488 = vmatpush1.msra.mxu0 0.0
      %489 = vmatprep.subr.mxu0 0.0
      %490 = vmatpush1.msra.mxu0 0.0
      %491 = vmatprep.subr.mxu0 0.0
      %492 = vmatpush1.msra.mxu0 0.0
      %493 = vmatprep.subr.mxu0 0.0
      %494 = vmatpush1.msra.mxu0 0.0
      %495 = vmatprep.subr.mxu0 0.0
      %496 = vmatpush1.msra.mxu0 0.0
      %497 = vmatprep.subr.mxu0 0.0
      %498 = vmatpush1.msra.mxu0 0.0
      %499 = vmatprep.subr.mxu0 0.0
      %500 = vmatpush1.msra.mxu0 0.0
      %501 = vmatprep.subr.mxu0 0.0
      %502 = vmatpush1.msra.mxu0 0.0
      %503 = vmatprep.subr.mxu0 0.0
      %504 = vmatpush1.msra.mxu0 0.0
      %505 = vmatprep.subr.mxu0 0.0
      %506 = vmatpush1.msra.mxu0 0.0
      %507 = vmatprep.subr.mxu0 0.0
      %508 = vmatpush1.msra.mxu0 %v480
      %509 = vmatprep.subr.mxu0 0.0
      %510 = vmatpush1.msra.mxu0 %v479
      %511 = vmatprep.subr.mxu0 0.0
      %512 = vmatpush1.msra.mxu0 %v478
      %513 = vmatprep.subr.mxu0 0.0
      %514 = vmatpush1.msra.mxu0 %v477
      %515 = vmatprep.subr.mxu0 0.0
      %516 = vmatpush2.msra.mxu0 0.0
      %517 = vmatprep.subr.mxu0 0.0
      %518 = vmatpush2.msra.mxu0 0.0
      %519 = vmatprep.subr.mxu0 0.0
      %520 = vmatpush2.msra.mxu0 0.0
      %521 = vmatprep.subr.mxu0 0.0
      %522 = vmatpush2.msra.mxu0 0.0
      %523 = vmatprep.subr.mxu0 0.0
      %524 = vmatpush2.msra.mxu0 0.0
      %525 = vmatprep.subr.mxu0 0.0
      %526 = vmatpush2.msra.mxu0 0.0
      %527 = vmatprep.subr.mxu0 0.0
      %528 = vmatpush2.msra.mxu0 0.0
      %529 = vmatprep.subr.mxu0 0.0
      %530 = vmatpush2.msra.mxu0 0.0
      %531 = vmatprep.subr.mxu0 0.0
      %532 = vmatpush2.msra.mxu0 0.0
      %533 = vmatprep.subr.mxu0 0.0
      %534 = vmatpush2.msra.mxu0 0.0
      %535 = vmatprep.subr.mxu0 0.0
      %536 = vmatpush2.msra.mxu0 0.0
      %537 = vmatprep.subr.mxu0 0.0
      %538 = vmatpush2.msra.mxu0 0.0
      %539 = vmatprep.subr.mxu0 0.0
      %540 = vmatpush2.msra.mxu0 0.0
      %541 = vmatprep.subr.mxu0 0.0
      %542 = vmatpush2.msra.mxu0 0.0
      %543 = vmatprep.subr.mxu0 0.0
      %544 = vmatpush2.msra.mxu0 0.0
      %545 = vmatprep.subr.mxu0 0.0
      %546 = vmatpush2.msra.mxu0 0.0
      %547 = vmatprep.mubr.f32.mxu0 0.0
      %548 = vmatmul.mubr.f32.gmra.mxu0 %v481
      %v549 = vpop.f32.mrf.mxu0
      %v550 = vadd.f32 0.0, %v549
      %v551 = vpop.f32.mrf.mxu0
      %552 = vdwg.mxu0
      // While loop
      $region85: #{tpu_custom_call.1} parent=77 // loop_pre_header
        _
      $region86: #{tpu_custom_call.1} parent=77 // loop_header
        %s554 = sphi 0, %s556
        %p555 = scmp.ge.s32.totalorder %s554, %s476
      $region87: #{tpu_custom_call.1} parent=77 // loop_header_branch
        %558 = sbr.rel (%p555) target = $region91
      $region88: #{tpu_custom_call.1} parent=77 // loop_body
        %s559 = sadd.s32 %s256, %s554
        %s560 = scalar_lea.vmem [#allocation14], %s559
        %v561 = vld [vmem:[%s560] sm:$0x1]
        %v562 = vadd.f32 %v561, %v550
        %v563 = vxor.u32 %v562, 2147483648
        %v564 = vmul.f32 %v563, 1.442695
        %v565 = vpow.pop %v564
        %v566 = vadd.f32 %v565, 1.0
        %v567 = vrcp.pop %v566
        %v568 = vmul.f32 1.0, %v567
        %v569 = vtanh.pop %v562
        %v570 = vmul.f32 %v568, %v458
        %572 = vrot.lane.b32.xlu0 %v569, 96
        %v573 = vpop.permute.xlu0 %572
        %v575 = vmul.f32 %v568, %v573
        %577 = vrot.lane.b32.xlu0 %v575, 96
        %v578 = vpop.permute.xlu0 %577
        %v580 = vadd.f32 %v570, %v578
        %s581 = scalar_lea.vmem %s5, %s559
        %v582 = vld [vmem:[%s581] sm:$0x1]
        %v583 = vld [vmem:[#allocation19] sm:$0xff]
        %v584 = vld [vmem:[#allocation19 + $0x8] sm:$0xff]
        %v585 = vld [vmem:[#allocation19 + $0x10] sm:$0xff]
        %v586 = vld [vmem:[#allocation19 + $0x18] sm:$0xff]
        %v588 = vsel %vm174, %v580, 0
        %590 = vmatprep.subr.mxu0 0.0
        %591 = vmatpush1.msra.mxu0 0.0
        %592 = vmatprep.subr.mxu0 0.0
        %593 = vmatpush1.msra.mxu0 0.0
        %594 = vmatprep.subr.mxu0 0.0
        %595 = vmatpush1.msra.mxu0 0.0
        %596 = vmatprep.subr.mxu0 0.0
        %597 = vmatpush1.msra.mxu0 0.0
        %598 = vmatprep.subr.mxu0 0.0
        %599 = vmatpush1.msra.mxu0 0.0
        %600 = vmatprep.subr.mxu0 0.0
        %601 = vmatpush1.msra.mxu0 0.0
        %602 = vmatprep.subr.mxu0 0.0
        %603 = vmatpush1.msra.mxu0 0.0
        %604 = vmatprep.subr.mxu0 0.0
        %605 = vmatpush1.msra.mxu0 0.0
        %606 = vmatprep.subr.mxu0 0.0
        %607 = vmatpush1.msra.mxu0 0.0
        %608 = vmatprep.subr.mxu0 0.0
        %609 = vmatpush1.msra.mxu0 0.0
        %610 = vmatprep.subr.mxu0 0.0
        %611 = vmatpush1.msra.mxu0 0.0
        %612 = vmatprep.subr.mxu0 0.0
        %613 = vmatpush1.msra.mxu0 0.0
        %614 = vmatprep.subr.mxu0 0.0
        %615 = vmatpush1.msra.mxu0 %v586
        %616 = vmatprep.subr.mxu0 0.0
        %617 = vmatpush1.msra.mxu0 %v585
        %618 = vmatprep.subr.mxu0 0.0
        %619 = vmatpush1.msra.mxu0 %v584
        %620 = vmatprep.subr.mxu0 0.0
        %621 = vmatpush1.msra.mxu0 %v583
        %622 = vmatprep.subr.mxu0 0.0
        %623 = vmatpush2.msra.mxu0 0.0
        %624 = vmatprep.subr.mxu0 0.0
        %625 = vmatpush2.msra.mxu0 0.0
        %626 = vmatprep.subr.mxu0 0.0
        %627 = vmatpush2.msra.mxu0 0.0
        %628 = vmatprep.subr.mxu0 0.0
        %629 = vmatpush2.msra.mxu0 0.0
        %630 = vmatprep.subr.mxu0 0.0
        %631 = vmatpush2.msra.mxu0 0.0
        %632 = vmatprep.subr.mxu0 0.0
        %633 = vmatpush2.msra.mxu0 0.0
        %634 = vmatprep.subr.mxu0 0.0
        %635 = vmatpush2.msra.mxu0 0.0
        %636 = vmatprep.subr.mxu0 0.0
        %637 = vmatpush2.msra.mxu0 0.0
        %638 = vmatprep.subr.mxu0 0.0
        %639 = vmatpush2.msra.mxu0 0.0
        %640 = vmatprep.subr.mxu0 0.0
        %641 = vmatpush2.msra.mxu0 0.0
        %642 = vmatprep.subr.mxu0 0.0
        %643 = vmatpush2.msra.mxu0 0.0
        %644 = vmatprep.subr.mxu0 0.0
        %645 = vmatpush2.msra.mxu0 0.0
        %646 = vmatprep.subr.mxu0 0.0
        %647 = vmatpush2.msra.mxu0 0.0
        %648 = vmatprep.subr.mxu0 0.0
        %649 = vmatpush2.msra.mxu0 0.0
        %650 = vmatprep.subr.mxu0 0.0
        %651 = vmatpush2.msra.mxu0 0.0
        %652 = vmatprep.subr.mxu0 0.0
        %653 = vmatpush2.msra.mxu0 0.0
        %654 = vmatprep.mubr.f32.mxu0 0.0
        %655 = vmatmul.mubr.f32.gmra.mxu0 %v588
        %v656 = vpop.f32.mrf.mxu0
        %v657 = vadd.f32 0.0, %v656
        %v658 = vpop.f32.mrf.mxu0
        %659 = vdwg.mxu0
        %v660 = vadd.f32 %v582, %v657
        %v661 = vxor.u32 %v660, 2147483648
        %v662 = vmul.f32 %v661, 1.442695
        %v663 = vpow.pop %v662
        %v664 = vadd.f32 %v663, 1.0
        %v665 = vrcp.pop %v664
        %v666 = vmul.f32 1.0, %v665
        %s667 = scalar_lea.vmem [#allocation4], %s559
        %668 = vst.msk [vmem:[%s667] sm:$0x1] %vm133, %v580
        %s669 = scalar_lea.vmem [#allocation5], %s559
        %670 = vst.msk [vmem:[%s669] sm:$0x1] %vm133, %v666
      $region89: #{tpu_custom_call.1} parent=77 // loop_footer
        %s556 = sadd.s32 %s554, 1
      $region90: #{tpu_custom_call.1} parent=77 // loop_footer_branch
        %553 = sbr.rel target = $region86
      $region91: #{tpu_custom_call.1} parent=77 // loop_exit
        _
    $region78: #{tpu_custom_call.1} parent=1 // loop_footer
      %s164 = sadd.s32 %s162, 1
    $region79: #{tpu_custom_call.1} parent=1 // loop_footer_branch
      %161 = sbr.rel target = $region75
    $region80: #{tpu_custom_call.1} parent=1 // loop_exit
      _
    // Predicated region
    $region92: #{tpu_custom_call.1} parent=1 // pred_check
      _
    $region93: #{tpu_custom_call.1} parent=1 // pred_check_branch
      %672 = sbr.rel (0) target = $region95
    $region94: #{tpu_custom_call.1} parent=1 // pred_region
      %s674 = ssub.s32 128, 128
      %675 = vsyncadd [#allocation9], %s674
      %s676 = sshll.u32 [#allocation20], 4
      %s677 = int_to_ptr.vmem [resolvable:$true] %s676
      %682 = dma.vmem_to_hbm [thread:$0]  %s677, 128, %s11, [#allocation9], 16, 16, 1
    $region95: #{tpu_custom_call.1} parent=1 // pred_fallthru
      _
    // Predicated region
    $region96: #{tpu_custom_call.1} parent=1 // pred_check
      _
    $region97: #{tpu_custom_call.1} parent=1 // pred_check_branch
      %684 = sbr.rel (0) target = $region99
    $region98: #{tpu_custom_call.1} parent=1 // pred_region
      %685 = dma.done [#allocation9], 128
    $region99: #{tpu_custom_call.1} parent=1 // pred_fallthru
      _
    %686 = vsyncpa [#allocation8], 1
    %687 = vsyncpa [#allocation15], 1
    %688 = vsyncpa [#allocation18], 1
    %689 = vsyncpa [#allocation9], 1
    %690 = vsyncpa [#allocation10], 1
    %691 = vsyncpa [#allocation11], 1

</llo_original>
